<compile_context>
chip_gen: v6e
topology: v6e:2x2x1
jax: 0.10.0
libtpu: 0.0.40
codegen_flags: <defaults>
</compile_context>

<pallas_src>
import functools

import jax
import jax.numpy as jnp
from jax import lax
from jax.experimental import pallas as pl
from jax.experimental.pallas import tpu as pltpu

_EPS = 1e-5  # nn.LayerNorm default


def _round_up(x, m):
    return ((x + m - 1) // m) * m


def _pick_time_tile(t_out, d, dtype):
    """Pick a time-tile size (multiple of 8) targeting ~2 MiB per input tile."""
    bytes_per_el = jnp.dtype(dtype).itemsize
    target_bytes = 2 << 20
    rows = max(8, (target_bytes // max(1, d * bytes_per_el)) // 8 * 8)
    return int(min(rows, _round_up(t_out, 8)))


def _seq_ln_kernel(lengths_ref, x_ref, gamma_ref, beta_ref, o_ref):
    # lengths_ref: SMEM [B] int32 (scalar prefetch)
    # x_ref:       VMEM (1, tT, D)   -- tile of the *full* [B, T, D] input
    # gamma_ref:   VMEM (1, D)
    # beta_ref:    VMEM (1, D)
    # o_ref:       VMEM (1, tT, D)   -- tile of the [B, T_out, D] output
    b = pl.program_id(0)
    t = pl.program_id(1)
    t_tile = x_ref.shape[1]
    d = x_ref.shape[2]
    tile_start = t * t_tile
    length_b = lengths_ref[b]

    @pl.when(tile_start >= length_b)
    def _():
        # Whole tile is padding: no reductions / rsqrt / affine needed.
        o_ref[...] = jnp.zeros_like(o_ref)

    @pl.when(tile_start < length_b)
    def _():
        x = x_ref[...]
        x32 = x.astype(jnp.float32)

        # Single-pass mean / variance (f32 accumulation; biased var + eps,
        # matching nn.LayerNorm).
        inv_d = jnp.float32(1.0 / d)
        s = jnp.sum(x32, axis=-1, keepdims=True)
        ss = jnp.sum(x32 * x32, axis=-1, keepdims=True)
        mean = s * inv_d
        var = jnp.maximum(ss * inv_d - mean * mean, 0.0)
        inv = lax.rsqrt(var + _EPS)

        gamma = gamma_ref[...].astype(jnp.float32)  # (1, D)
        beta = beta_ref[...].astype(jnp.float32)    # (1, D)
        y = (x32 - mean) * inv * gamma + beta       # (1, tT, D)

        # Zero out padded time steps (global t >= lengths[b]).
        t_idx = lax.broadcasted_iota(jnp.int32, x.shape, dimension=1) + tile_start
        valid = t_idx < length_b
        o_ref[...] = jnp.where(valid, y, 0.0).astype(o_ref.dtype)


@functools.partial(jax.jit, static_argnames=("max_len", "t_tile"))
def _seq_layer_norm_call(seq, lengths, gamma, beta, *, max_len, t_tile):
    B, T, D = seq.shape
    T_out = max_len
    nT = pl.cdiv(T_out, t_tile)
    gamma2 = gamma.reshape(1, D)
    beta2 = beta.reshape(1, D)

    return pl.pallas_call(
        _seq_ln_kernel,
        out_shape=jax.ShapeDtypeStruct((B, T_out, D), seq.dtype),
        grid_spec=pltpu.PrefetchScalarGridSpec(
            num_scalar_prefetch=1,
            grid=(B, nT),
            in_specs=[
                # Full [B, T, D] input; only the first T_out rows are ever
                # addressed by the grid (no wrapper-side slice copy).
                pl.BlockSpec((1, t_tile, D), lambda b, t, lens: (b, t, 0)),
                pl.BlockSpec((1, D), lambda b, t, lens: (0, 0)),
                pl.BlockSpec((1, D), lambda b, t, lens: (0, 0)),
            ],
            out_specs=pl.BlockSpec((1, t_tile, D), lambda b, t, lens: (b, t, 0)),
        ),
        compiler_params=pltpu.CompilerParams(
            dimension_semantics=("parallel", "parallel"),
            vmem_limit_bytes=64 * 1024 * 1024,
        ),
    )(lengths.astype(jnp.int32), seq, gamma2, beta2)


def seq_layer_norm(seq, lengths, gamma, beta, max_len=None):
    """
    :param seq:     [B, T, D]
    :param lengths: [B]  (lengths[i] <= T)
    :param max_len: optional static int; pass it from the caller (ideally
                    bucketed) to avoid a device->host sync + recompile per
                    distinct max length.
    :return:        [B, max(lengths), D]
    """
    if max_len is None:
        max_len = int(jax.device_get(jnp.max(lengths)))
    D = seq.shape[-1]
    t_tile = _pick_time_tile(max_len, D, seq.dtype)
    return _seq_layer_norm_call(seq, lengths, gamma, beta,
                                max_len=max_len, t_tile=t_tile)


def _reference(seq, lengths, gamma, beta):
    """Pure-JAX reference mirroring the PyTorch pack/LN/unpack semantics."""
    max_len = int(jax.device_get(jnp.max(lengths)))
    x = seq[:, :max_len, :].astype(jnp.float32)
    mean = jnp.mean(x, axis=-1, keepdims=True)
    var = jnp.mean((x - mean) ** 2, axis=-1, keepdims=True)
    y = (x - mean) / jnp.sqrt(var + _EPS) * gamma + beta
    t_idx = jnp.arange(max_len)[None, :, None]
    valid = t_idx < lengths[:, None, None]
    return jnp.where(valid, y, 0.0).astype(seq.dtype)


if __name__ == "__main__":
    B, T, D = 2, 8, 32
    key = jax.random.PRNGKey(0)
    k_seq, _ = jax.random.split(key)

    seq = jax.random.normal(k_seq, (B, T, D), dtype=jnp.float32)
    lengths = jnp.array([5, 8], dtype=jnp.int32)

    # Deterministic LayerNorm params (n_state = D). Default torch init is
    # weight=1, bias=0; perturb slightly so the affine path is exercised.
    gamma = 1.0 + 0.01 * jnp.arange(D, dtype=jnp.float32)
    beta = 0.01 * jnp.arange(D, dtype=jnp.float32)

    out = seq_layer_norm(seq, lengths, gamma, beta)
    out = jax.block_until_ready(out)

    ref = _reference(seq, lengths, gamma, beta)
    assert out.shape == ref.shape
    assert jnp.allclose(out, ref, atol=1e-5, rtol=1e-5)

    print("KERNEL_OK")
</pallas_src>

<mosaic_0001>
module attributes {stable_mosaic.version = 11 : i64} {
  func.func @_seq_ln_kernel(%arg0: i32, %arg1: i32, %arg2: memref<2xi32, #tpu.memory_space<smem>>, %arg3: memref<1x8x32xf32, #tpu.memory_space<vmem>>, %arg4: memref<1x32xf32, #tpu.memory_space<vmem>>, %arg5: memref<1x32xf32, #tpu.memory_space<vmem>>, %arg6: memref<1x8x32xf32, #tpu.memory_space<vmem>>) attributes {dimension_semantics = [#tpu.dimension_semantics<parallel>, #tpu.dimension_semantics<parallel>], iteration_bounds = array<i64: 2, 1>, scalar_prefetch = 1 : i64, scratch_operands = 0 : i64, tpu.core_type = #tpu.core_type<tc>, window_params = [{transform_indices = @transform_0, window_bounds = array<i64: 1, 8, 32>}, {pipeline_mode = #tpu.pipeline_mode<synchronous>, transform_indices = @transform_1, window_bounds = array<i64: 1, 32>}, {pipeline_mode = #tpu.pipeline_mode<synchronous>, transform_indices = @transform_2, window_bounds = array<i64: 1, 32>}, {transform_indices = @transform_3, window_bounds = array<i64: 1, 8, 32>}]} {
    %c8_i32 = arith.constant 8 : i32
    %0 = arith.muli %arg1, %c8_i32 : i32
    %1 = arith.index_cast %arg0 : i32 to index
    %2 = memref.load %arg2[%1] : memref<2xi32, #tpu.memory_space<smem>>
    %3 = arith.cmpi sge, %0, %2 : i32
    %4 = arith.extui %3 : i1 to i32
    %c0_i32 = arith.constant 0 : i32
    %5 = arith.cmpi ne, %4, %c0_i32 : i32
    scf.if %5 {
      %cst = arith.constant 0.000000e+00 : f32
      %9 = vector.broadcast %cst : f32 to vector<1x8x32xf32>
      %c0 = arith.constant 0 : index
      %c0_1 = arith.constant 0 : index
      %c0_2 = arith.constant 0 : index
      %10 = vector.load %arg6[%c0, %c0_1, %c0_2] : memref<1x8x32xf32, #tpu.memory_space<vmem>>, vector<1x8x32xf32>
      tpu.vector_store %arg6[%c0, %c0_1, %c0_2], %9 {strides = array<i32>} : memref<1x8x32xf32, #tpu.memory_space<vmem>>, vector<1x8x32xf32>,
    } else {
    }
    %6 = arith.cmpi slt, %0, %2 : i32
    %7 = arith.extui %6 : i1 to i32
    %c0_i32_0 = arith.constant 0 : i32
    %8 = arith.cmpi ne, %7, %c0_i32_0 : i32
    scf.if %8 {
      %c0 = arith.constant 0 : index
      %c0_1 = arith.constant 0 : index
      %c0_2 = arith.constant 0 : index
      %9 = vector.load %arg3[%c0, %c0_1, %c0_2] : memref<1x8x32xf32, #tpu.memory_space<vmem>>, vector<1x8x32xf32>
      %cst = arith.constant dense<0.000000e+00> : vector<1x8xf32>
      %10 = vector.multi_reduction <add>, %9, %cst [2] : vector<1x8x32xf32> to vector<1x8xf32>
      %11 = vector.shape_cast %10 : vector<1x8xf32> to vector<1x8x1xf32>
      %12 = arith.mulf %9, %9 : vector<1x8x32xf32>
      %cst_3 = arith.constant dense<0.000000e+00> : vector<1x8xf32>
      %13 = vector.multi_reduction <add>, %12, %cst_3 [2] : vector<1x8x32xf32> to vector<1x8xf32>
      %14 = vector.shape_cast %13 : vector<1x8xf32> to vector<1x8x1xf32>
      %cst_4 = arith.constant 3.125000e-02 : f32
      %15 = vector.broadcast %cst_4 : f32 to vector<1x8x1xf32>
      %16 = arith.mulf %11, %15 : vector<1x8x1xf32>
      %cst_5 = arith.constant 3.125000e-02 : f32
      %17 = vector.broadcast %cst_5 : f32 to vector<1x8x1xf32>
      %18 = arith.mulf %14, %17 : vector<1x8x1xf32>
      %19 = arith.mulf %16, %16 : vector<1x8x1xf32>
      %20 = arith.subf %18, %19 : vector<1x8x1xf32>
      %cst_6 = arith.constant 0.000000e+00 : f32
      %21 = vector.broadcast %cst_6 : f32 to vector<1x8x1xf32>
      %22 = arith.maximumf %20, %21 : vector<1x8x1xf32>
      %cst_7 = arith.constant 9.99999974E-6 : f32
      %23 = vector.broadcast %cst_7 : f32 to vector<1x8x1xf32>
      %24 = arith.addf %22, %23 : vector<1x8x1xf32>
      %25 = math.rsqrt %24 : vector<1x8x1xf32>
      %c0_8 = arith.constant 0 : index
      %c0_9 = arith.constant 0 : index
      %26 = vector.load %arg4[%c0_8, %c0_9] : memref<1x32xf32, #tpu.memory_space<vmem>>, vector<1x32xf32>
      %c0_10 = arith.constant 0 : index
      %c0_11 = arith.constant 0 : index
      %27 = vector.load %arg5[%c0_10, %c0_11] : memref<1x32xf32, #tpu.memory_space<vmem>>, vector<1x32xf32>
      %28 = vector.broadcast %16 : vector<1x8x1xf32> to vector<1x8x32xf32>
      %29 = arith.subf %9, %28 : vector<1x8x32xf32>
      %30 = vector.broadcast %25 : vector<1x8x1xf32> to vector<1x8x32xf32>
      %31 = arith.mulf %29, %30 : vector<1x8x32xf32>
      %32 = vector.shape_cast %26 : vector<1x32xf32> to vector<1x1x32xf32>
      %33 = vector.broadcast %32 : vector<1x1x32xf32> to vector<1x8x32xf32>
      %34 = arith.mulf %31, %33 : vector<1x8x32xf32>
      %35 = vector.shape_cast %27 : vector<1x32xf32> to vector<1x1x32xf32>
      %36 = vector.broadcast %35 : vector<1x1x32xf32> to vector<1x8x32xf32>
      %37 = arith.addf %34, %36 : vector<1x8x32xf32>
      %38 = tpu.iota {dimensions = array<i32: 1>} : vector<1x8x32xi32>
      %39 = vector.broadcast %0 : i32 to vector<1x8x32xi32>
      %40 = arith.addi %38, %39 : vector<1x8x32xi32>
      %41 = vector.broadcast %2 : i32 to vector<1x8x32xi32>
      %42 = arith.cmpi slt, %40, %41 : vector<1x8x32xi32>
      %cst_12 = arith.constant 0.000000e+00 : f32
      %43 = vector.broadcast %cst_12 : f32 to vector<1x8x32xf32>
      %44 = arith.select %42, %37, %43 : vector<1x8x32xi1>, vector<1x8x32xf32>
      %c0_13 = arith.constant 0 : index
      %c0_14 = arith.constant 0 : index
      %c0_15 = arith.constant 0 : index
      %45 = vector.load %arg6[%c0_13, %c0_14, %c0_15] : memref<1x8x32xf32, #tpu.memory_space<vmem>>, vector<1x8x32xf32>
      tpu.vector_store %arg6[%c0_13, %c0_14, %c0_15], %44 {strides = array<i32>} : memref<1x8x32xf32, #tpu.memory_space<vmem>>, vector<1x8x32xf32>,
    } else {
    }
    return
  }
  func.func @transform_0(%arg0: i32, %arg1: i32, %arg2: memref<2xi32, #tpu.memory_space<smem>>) -> (i32, i32, i32) {
    %c0_i32 = arith.constant 0 : i32
    %c0_i32_0 = arith.constant 0 : i32
    return %arg0, %arg1, %c0_i32 : i32, i32, i32
  }
  func.func @transform_1(%arg0: i32, %arg1: i32, %arg2: memref<2xi32, #tpu.memory_space<smem>>) -> (i32, i32) {
    %c0_i32 = arith.constant 0 : i32
    %c0_i32_0 = arith.constant 0 : i32
    %c0_i32_1 = arith.constant 0 : i32
    return %c0_i32, %c0_i32_0 : i32, i32
  }
  func.func @transform_2(%arg0: i32, %arg1: i32, %arg2: memref<2xi32, #tpu.memory_space<smem>>) -> (i32, i32) {
    %c0_i32 = arith.constant 0 : i32
    %c0_i32_0 = arith.constant 0 : i32
    %c0_i32_1 = arith.constant 0 : i32
    return %c0_i32, %c0_i32_0 : i32, i32
  }
  func.func @transform_3(%arg0: i32, %arg1: i32, %arg2: memref<2xi32, #tpu.memory_space<smem>>) -> (i32, i32, i32) {
    %c0_i32 = arith.constant 0 : i32
    %c0_i32_0 = arith.constant 0 : i32
    return %arg0, %arg1, %c0_i32 : i32, i32, i32
  }
}

</mosaic_0001>

<llo_original>
// kernel: _seq_layer_norm_call.1
$region0: #{_seq_layer_norm_call.1}
  #allocation0 [shape = 'u32[]', space=smem, size = 0x4, offset = 0x4, fixed_abs, tag = 'smem constant byte address 0x4 - core index']
  #allocation1 [shape = 'u32[144,128]{1,0:T(1,128)}', space=vmem, size = 0x12000, scoped, tag = 'internal scratch']
  #allocation2 [shape = 's32[1]{0}', space=sflag, size = 0x4, scoped, tag = 'scoped memory for _seq_layer_norm_call.1']
  #allocation3 [shape = 'u8[512]{0}', space=smem, size = 0x200, scoped, tag = 'prefetched SMEM operand 0']
  %s0 = inlined_call_operand.vmem [shape: s32[2], index: 0, kind: input, shape index: {}]
  %s1 = inlined_call_operand.hbm [shape: f32[2,8,32], index: 1, kind: input, shape index: {}]
  %s2 = inlined_call_operand.vmem [shape: f32[1,32], index: 2, kind: input, shape index: {}]
  %s3 = inlined_call_operand.vmem [shape: f32[1,32], index: 3, kind: input, shape index: {}]
  %s4 = inlined_call_operand.hbm [shape: f32[2,8,32], index: 4, kind: output, shape index: {}]
  %s5 = sld [smem:[#allocation0]]
  $region57: #{_seq_layer_norm_call.1} parent=0
    _
  %s7 = ssub.s32 1, %s5
  %s8 = scalar_select 0, %s7, %s5
  %s9 = sshll.u32 %s0, 4
  %s10 = int_to_ptr.vmem [resolvable:$true] %s9
  %12 = dma.vmem_to_smem %s10, 16, [#allocation3], [#allocation2]
  %13 = dma.done [#allocation2], 16
  %14 = sfence
  $region1: #{_seq_layer_norm_call.1} parent=0
    #allocation4 [shape = 'u8[8192]{0}', space=vmem, size = 0x2000, scoped, tag = 'input window, operand 1']
    #allocation5 [shape = 's32[2]{0}', space=sflag, size = 0x8, scoped, tag = 'scoped memory for _seq_layer_norm_call.1']
    #allocation6 [shape = 's32[2]{0}', space=sflag, size = 0x8, scoped, tag = 'scoped memory for _seq_layer_norm_call.1']
    #allocation7 [shape = 'u8[8192]{0}', space=vmem, size = 0x2000, scoped, tag = 'output window, operand 0']
    %15 = vsyncpa [#allocation5], 0
    %s16 = scalar_lea.sflag [#allocation5], 1
    %17 = vsyncpa %s16, 0
    %18 = vsyncpa [#allocation6], 0
    %s19 = scalar_lea.sflag [#allocation6], 1
    %20 = vsyncpa %s19, 0
    loop: start=0, step=1, limit=4
    $region2: #{_seq_layer_norm_call.1} parent=1 // loop_pre_header
      _
    $region3: #{_seq_layer_norm_call.1} parent=1 // loop_header
      %s22 = sphi 0, %s26
      %p23 = scmp.ge.s32.totalorder %s22, 4
      %s29 = sphi 0, %s41
      %s30 = sphi 0, %s37
      %s31 = sphi 0, %s29
      %s32 = sphi 0, %s30
      %s33 = sphi 0, %s31
      %s34 = sphi 0, %s32
      %s46 = sphi 0, %s48
      %s49 = sphi 0, %s46
      %s50 = sphi 0, %s49
      %s66 = sphi 0, %s50
      %s70 = sphi 0, %s70
      %s72 = sphi 0, %s70
      %s73 = sphi 0, %s72
      %s87 = sphi 0, %s73
      %s91 = sphi 0, %s91
      %s93 = sphi 0, %s91
      %s94 = sphi 0, %s93
      %s108 = sphi 0, %s94
      %s116 = sphi 0, %s118
      %s119 = sphi 0, %s116
      %s120 = sphi 0, %s119
      %s136 = sphi 0, %s120
    $region4: #{_seq_layer_norm_call.1} parent=1 // loop_header_branch
      %25 = sbr.rel (%p23) target = $region8
    $region5: #{_seq_layer_norm_call.1} parent=1 // loop_body
      %s27 = ssub.s32 %s22, 1
      %s28 = ssub.s32 %s22, 2
      %s35 = sadd.s32 1, %s30
      %p36 = scmp.ge.s32.totalorder %s35, 1
      %s37 = scalar_select %p36, 0, %s35
      %s38 = sadd.s32 1, %s29
      %s39 = scalar_select %p36, %s38, %s29
      %p40 = scmp.ge.s32.totalorder %s39, 2
      %s41 = scalar_select %p40, 0, %s39
      %s42 = ssub.s32 %s29, %s41
      %s43 = ssub.s32 %s30, %s37
      %s44 = sor.u32 %s42, %s43
      %p45 = scmp.eq.s32.totalorder %s44, 0
      %s47 = sadd.s32 %s46, 1
      %s48 = scalar_select %p45, %s46, %s47
      %p51 = pneg %p45
      %p52 = scmp.eq.s32.totalorder %s22, 1
      %p53 = por %p51, %p52
      %p54 = scmp.ne.s32.totalorder %s46, %s49
      %p55 = scmp.eq.s32.totalorder %s22, 0
      %p56 = por %p54, %p55
      %p57 = scmp.ne.s32.totalorder %s46, %s49
      %p58 = scmp.eq.s32.totalorder %s27, 1
      %p59 = por %p57, %p58
      %p60 = scmp.ne.s32.totalorder %s49, %s50
      %p61 = scmp.eq.s32.totalorder %s27, 0
      %p62 = por %p60, %p61
      %p63 = scmp.ne.s32.totalorder %s49, %s50
      %p64 = scmp.eq.s32.totalorder %s28, 1
      %p65 = por %p63, %p64
      %p67 = scmp.ne.s32.totalorder %s50, %s66
      %p68 = scmp.eq.s32.totalorder %s28, 0
      %p69 = por %p67, %p68
      %s71 = sadd.s32 %s70, 1
      %p74 = scmp.eq.s32.totalorder %s22, 1
      %p75 = scmp.ne.s32.totalorder %s70, %s72
      %p76 = scmp.eq.s32.totalorder %s22, 0
      %p77 = por %p75, %p76
      %p78 = scmp.ne.s32.totalorder %s70, %s72
      %p79 = scmp.eq.s32.totalorder %s27, 1
      %p80 = por %p78, %p79
      %p81 = scmp.ne.s32.totalorder %s72, %s73
      %p82 = scmp.eq.s32.totalorder %s27, 0
      %p83 = por %p81, %p82
      %p84 = scmp.ne.s32.totalorder %s72, %s73
      %p85 = scmp.eq.s32.totalorder %s28, 1
      %p86 = por %p84, %p85
      %p88 = scmp.ne.s32.totalorder %s73, %s87
      %p89 = scmp.eq.s32.totalorder %s28, 0
      %p90 = por %p88, %p89
      %s92 = sadd.s32 %s91, 1
      %p95 = scmp.eq.s32.totalorder %s22, 1
      %p96 = scmp.ne.s32.totalorder %s91, %s93
      %p97 = scmp.eq.s32.totalorder %s22, 0
      %p98 = por %p96, %p97
      %p99 = scmp.ne.s32.totalorder %s91, %s93
      %p100 = scmp.eq.s32.totalorder %s27, 1
      %p101 = por %p99, %p100
      %p102 = scmp.ne.s32.totalorder %s93, %s94
      %p103 = scmp.eq.s32.totalorder %s27, 0
      %p104 = por %p102, %p103
      %p105 = scmp.ne.s32.totalorder %s93, %s94
      %p106 = scmp.eq.s32.totalorder %s28, 1
      %p107 = por %p105, %p106
      %p109 = scmp.ne.s32.totalorder %s94, %s108
      %p110 = scmp.eq.s32.totalorder %s28, 0
      %p111 = por %p109, %p110
      %s112 = ssub.s32 %s29, %s41
      %s113 = ssub.s32 %s30, %s37
      %s114 = sor.u32 %s112, %s113
      %p115 = scmp.eq.s32.totalorder %s114, 0
      %s117 = sadd.s32 %s116, 1
      %s118 = scalar_select %p115, %s116, %s117
      %p121 = pneg %p115
      %p122 = scmp.eq.s32.totalorder %s22, 1
      %p123 = por %p121, %p122
      %p124 = scmp.ne.s32.totalorder %s116, %s119
      %p125 = scmp.eq.s32.totalorder %s22, 0
      %p126 = por %p124, %p125
      %p127 = scmp.ne.s32.totalorder %s116, %s119
      %p128 = scmp.eq.s32.totalorder %s27, 1
      %p129 = por %p127, %p128
      %p130 = scmp.ne.s32.totalorder %s119, %s120
      %p131 = scmp.eq.s32.totalorder %s27, 0
      %p132 = por %p130, %p131
      %p133 = scmp.ne.s32.totalorder %s119, %s120
      %p134 = scmp.eq.s32.totalorder %s28, 1
      %p135 = por %p133, %p134
      %p137 = scmp.ne.s32.totalorder %s120, %s136
      %p138 = scmp.eq.s32.totalorder %s28, 0
      %p139 = por %p137, %p138
      %p140 = scmp.le.s32.totalorder 1, %s22
      %p141 = scmp.lt.s32.totalorder %s22, 3
      %p142 = pnand %p140, %p141
      %p143 = pneg %p142
      // Predicated region
      $region9: #{_seq_layer_norm_call.1} parent=5 // pred_check
        _
      $region10: #{_seq_layer_norm_call.1} parent=5 // pred_check_branch
        %145 = sbr.rel (%p142) target = $region12
      $region11: #{_seq_layer_norm_call.1} parent=5 // pred_region
        %s146 = ssub.s32 %s22, 1
        // Predicated region
        $region13: #{_seq_layer_norm_call.1} parent=11 // pred_check
          %p147 = pneg %p83
        $region14: #{_seq_layer_norm_call.1} parent=11 // pred_check_branch
          %149 = sbr.rel (%p147) target = $region16
        $region15: #{_seq_layer_norm_call.1} parent=11 // pred_region
          _
        $region16: #{_seq_layer_norm_call.1} parent=11 // pred_fallthru
          _
        // Predicated region
        $region17: #{_seq_layer_norm_call.1} parent=11 // pred_check
          %p150 = pneg %p104
        $region18: #{_seq_layer_norm_call.1} parent=11 // pred_check_branch
          %152 = sbr.rel (%p150) target = $region20
        $region19: #{_seq_layer_norm_call.1} parent=11 // pred_region
          _
        $region20: #{_seq_layer_norm_call.1} parent=11 // pred_fallthru
          _
      $region12: #{_seq_layer_norm_call.1} parent=5 // pred_fallthru
        _
      %p153 = scmp.lt.s32.totalorder %s22, 2
      // Predicated region
      $region21: #{_seq_layer_norm_call.1} parent=5 // pred_check
        %p154 = pneg %p153
      $region22: #{_seq_layer_norm_call.1} parent=5 // pred_check_branch
        %156 = sbr.rel (%p154) target = $region24
      $region23: #{_seq_layer_norm_call.1} parent=5 // pred_region
        // Predicated region
        $region25: #{_seq_layer_norm_call.1} parent=23 // pred_check
          %p157 = pneg %p56
        $region26: #{_seq_layer_norm_call.1} parent=23 // pred_check_branch
          %159 = sbr.rel (%p157) target = $region28
        $region27: #{_seq_layer_norm_call.1} parent=23 // pred_region
          %s160 = sand.u32 %s46, 1
          %s161 = scalar_lea.sflag [#allocation5], %s160
          %s162 = sand.u32 %s46, 1
          %s163 = smul.addr %s162, 8
          %s164 = scalar_lea.vmem [#allocation4], %s163
          %s166 = ssub.s32 128, 128
          %167 = vsyncadd %s161, %s166
          %s168 = sadd.s32 %s30, %s29
          %s169 = smul.addr %s168, 128
          %s170 = scalar_lea.hbm %s1, %s169
          %s172 = sshll.u32 %s164, 4
          %s173 = int_to_ptr.vmem [resolvable:$true] %s172
          %175 = dma.hbm_to_vmem [thread:$0]  %s170, 128, %s173, %s161
        $region28: #{_seq_layer_norm_call.1} parent=23 // pred_fallthru
          _
      $region24: #{_seq_layer_norm_call.1} parent=5 // pred_fallthru
        _
      %p176 = scmp.le.s32.totalorder 1, %s22
      %p177 = scmp.lt.s32.totalorder %s22, 3
      %p178 = pnand %p176, %p177
      %p179 = pneg %p178
      // Predicated region
      $region29: #{_seq_layer_norm_call.1} parent=5 // pred_check
        _
      $region30: #{_seq_layer_norm_call.1} parent=5 // pred_check_branch
        %181 = sbr.rel (%p178) target = $region32
      $region31: #{_seq_layer_norm_call.1} parent=5 // pred_region
        %s182 = ssub.s32 %s22, 1
        %s183 = sand.u32 %s49, 1
        %s184 = scalar_lea.sflag [#allocation5], %s183
        %s185 = sand.u32 %s49, 1
        %s186 = smul.addr %s185, 8
        %s187 = scalar_lea.vmem [#allocation4], %s186
        // Predicated region
        $region33: #{_seq_layer_norm_call.1} parent=31 // pred_check
          %p188 = pneg %p62
        $region34: #{_seq_layer_norm_call.1} parent=31 // pred_check_branch
          %190 = sbr.rel (%p188) target = $region36
        $region35: #{_seq_layer_norm_call.1} parent=31 // pred_region
          %191 = dma.done %s184, 128
        $region36: #{_seq_layer_norm_call.1} parent=31 // pred_fallthru
          _
        %s192 = sand.u32 %s49, 1
        %s193 = scalar_lea.sflag [#allocation5], %s192
        %s194 = sand.u32 %s49, 1
        %s195 = smul.addr %s194, 8
        %s196 = scalar_lea.vmem [#allocation4], %s195
        %p197 = pneg %p62
        %p198 = pneg %p59
        %p199 = pneg %p83
        %p200 = pneg %p80
        %p201 = pneg %p104
        %p202 = pneg %p101
        %p203 = pneg %p132
        %p204 = pneg %p129
        %s205 = sand.u32 %s119, 1
        %s206 = scalar_lea.sflag [#allocation6], %s205
        %s207 = sand.u32 %s119, 1
        %s208 = smul.addr %s207, 8
        %s209 = scalar_lea.vmem [#allocation7], %s208
        %s210 = smul.u32 %s32, 8
        %s211 = sld [smem:[#allocation3 + %s31]]
        %p212 = scmp.ge.s32.totalorder %s210, %s211
        // Predicated region
        $region37: #{_seq_layer_norm_call.1} parent=31 // pred_check
          %p213 = pneg %p212
        $region38: #{_seq_layer_norm_call.1} parent=31 // pred_check_branch
          %215 = sbr.rel (%p213) target = $region40
        $region39: #{_seq_layer_norm_call.1} parent=31 // pred_region
          %vm216 = vcmask 261120
          %217 = vst.msk [vmem:[%s209] sm:$0xff] %vm216, 0.0
        $region40: #{_seq_layer_norm_call.1} parent=31 // pred_fallthru
          _
        %p218 = scmp.lt.s32.totalorder %s210, %s211
        // Predicated region
        $region41: #{_seq_layer_norm_call.1} parent=31 // pred_check
          %p219 = pneg %p218
        $region42: #{_seq_layer_norm_call.1} parent=31 // pred_check_branch
          %221 = sbr.rel (%p219) target = $region44
        $region43: #{_seq_layer_norm_call.1} parent=31 // pred_region
          %v222 = vld [vmem:[%s187] sm:$0xff]
          %vm223 = vcmask 261120
          %v224 = vsel %vm223, %v222, 0.0
          %225 = vadd.xlane.f32.xlu0 %v224
          %v226 = vpop.xlane.xlu0 %225
          %v227 = vmul.f32 %v222, %v222
          %v228 = vsel %vm223, %v227, 0.0
          %229 = vadd.xlane.f32.xlu0 %v228
          %v230 = vpop.xlane.xlu0 %229
          %v231 = vmul.f32 %v226, 0.03125
          %v232 = vmul.f32 %v230, 0.03125
          %v233 = vmul.f32 %v231, %v231
          %v234 = vsub.f32 %v232, %v233
          %v235 = vmax.f32 %v234, 0.0
          %v236 = vadd.f32 %v235, 1e-05
          %v237 = vrsqrt.pop %v236
          %v238 = vld [vmem:[%s2] sm:$0x1]
          %v239 = vld [vmem:[%s3] sm:$0x1]
          %v240 = vsub.f32 %v222, %v231
          %v241 = vmul.f32 %v240, %v237
          %v243 = vlaneseq
          %v244 = vshrl.u32 %v243, 7
          %v245 = vsub.s32 0, %v244
          %v246 = vrot.slane %v238, %v245
          %v248 = vmul.f32 %v241, %v246
          %v250 = vlaneseq
          %v251 = vshrl.u32 %v250, 7
          %v252 = vsub.s32 0, %v251
          %v253 = vrot.slane %v239, %v252
          %v255 = vadd.f32 %v248, %v253
          %v256 = vlaneseq
          %v257 = vshrl.u32 %v256, 7
          %v258 = vstv %s210
          %v259 = vadd.s32 %v257, %v258
          %v260 = vstv %s211
          %vm261 = vcmp.lt.s32.totalorder %v259, %v260
          %v262 = vsel %vm261, %v255, 0.0
          %263 = vst.msk [vmem:[%s209] sm:$0xff] %vm223, %v262
        $region44: #{_seq_layer_norm_call.1} parent=31 // pred_fallthru
          _
        %s264 = sand.u32 %s119, 1
        %s265 = scalar_lea.sflag [#allocation6], %s264
        %s266 = sand.u32 %s119, 1
        %s267 = smul.addr %s266, 8
        %s268 = scalar_lea.vmem [#allocation7], %s267
        // Predicated region
        $region45: #{_seq_layer_norm_call.1} parent=31 // pred_check
          %p269 = pneg %p129
        $region46: #{_seq_layer_norm_call.1} parent=31 // pred_check_branch
          %271 = sbr.rel (%p269) target = $region48
        $region47: #{_seq_layer_norm_call.1} parent=31 // pred_region
          %s273 = ssub.s32 128, 128
          %274 = vsyncadd %s265, %s273
          %s275 = sadd.s32 %s32, %s31
          %s276 = smul.addr %s275, 128
          %s277 = scalar_lea.hbm %s4, %s276
          %s279 = sshll.u32 %s268, 4
          %s280 = int_to_ptr.vmem [resolvable:$true] %s279
          %282 = dma.vmem_to_hbm [thread:$0]  %s280, 128, %s277, %s265
        $region48: #{_seq_layer_norm_call.1} parent=31 // pred_fallthru
          _
      $region32: #{_seq_layer_norm_call.1} parent=5 // pred_fallthru
        _
      %p283 = scmp.le.s32.totalorder 2, %s22
      // Predicated region
      $region49: #{_seq_layer_norm_call.1} parent=5 // pred_check
        %p284 = pneg %p283
      $region50: #{_seq_layer_norm_call.1} parent=5 // pred_check_branch
        %286 = sbr.rel (%p284) target = $region52
      $region51: #{_seq_layer_norm_call.1} parent=5 // pred_region
        %s287 = ssub.s32 %s22, 2
        // Predicated region
        $region53: #{_seq_layer_norm_call.1} parent=51 // pred_check
          %p288 = pneg %p135
        $region54: #{_seq_layer_norm_call.1} parent=51 // pred_check_branch
          %290 = sbr.rel (%p288) target = $region56
        $region55: #{_seq_layer_norm_call.1} parent=51 // pred_region
          %s291 = sand.u32 %s120, 1
          %s292 = scalar_lea.sflag [#allocation6], %s291
          %s293 = sand.u32 %s120, 1
          %s294 = smul.addr %s293, 8
          %s295 = scalar_lea.vmem [#allocation7], %s294
          %296 = dma.done %s292, 128
        $region56: #{_seq_layer_norm_call.1} parent=51 // pred_fallthru
          _
      $region52: #{_seq_layer_norm_call.1} parent=5 // pred_fallthru
        _
    $region6: #{_seq_layer_norm_call.1} parent=1 // loop_footer
      %s26 = sadd.s32 1, %s22
    $region7: #{_seq_layer_norm_call.1} parent=1 // loop_footer_branch
      %21 = sbr.rel target = $region3
    $region8: #{_seq_layer_norm_call.1} parent=1 // loop_exit
      _
    %297 = vsyncpa [#allocation5], 1
    %s298 = scalar_lea.sflag [#allocation5], 1
    %299 = vsyncpa %s298, 1
    %300 = vsyncpa [#allocation6], 1
    %s301 = scalar_lea.sflag [#allocation6], 1
    %302 = vsyncpa %s301, 1

</llo_original>
